<compile_context>
chip_gen: v5e
topology: v5e:2x2
jax: 0.10.0
libtpu: 0.0.40
codegen_flags: <defaults>
</compile_context>

<pallas_src>
import jax
import jax.numpy as jnp
from jax.experimental import pallas as pl
from jax.experimental.pallas import tpu as pltpu

FEATURES = 8        # autoregressive features
HIDDEN = 32         # hidden_features
NUM_BLOCKS = 2      # module default; kernel body unrolled for it
OUTPUT_MULT = 1
OUT_FEATURES = FEATURES * OUTPUT_MULT

BATCH = 1024        # example batch
MAX_GRID_STEPS = 2  # 2 parallel steps -> one per TC on v7x; set 1 on v5e/v6e if desired


# ----------------------------- MADE mask construction -----------------------------

def _get_input_degrees(features):
    return jnp.arange(1, features + 1, dtype=jnp.int32)


def _hidden_mask_and_degrees(in_degrees, out_features, features):
    # MaskedLinear._get_mask_and_degrees, is_output=False, random_mask=False
    max_ = max(1, features - 1)
    min_ = min(1, features - 1)
    out_deg = jnp.arange(out_features, dtype=jnp.int32) % max_ + min_
    mask = (out_deg[:, None] >= in_degrees[None, :]).astype(jnp.float32)
    return mask, out_deg


def _output_mask_and_degrees(in_degrees, out_features, features):
    # MaskedLinear._get_mask_and_degrees, is_output=True
    out_deg = jnp.tile(_get_input_degrees(features), out_features // features)
    mask = (out_deg[:, None] > in_degrees[None, :]).astype(jnp.float32)
    return mask, out_deg


# ----------------------------- parameter initialization ---------------------------

def _linear_init(key, out_features, in_features, scale=None):
    # Mimics torch.nn.Linear default init range (uniform +/- 1/sqrt(fan_in)),
    # or the residual block's zero_initialization (uniform +/- 1e-3).
    kw, kb = jax.random.split(key)
    bound = (1.0 / jnp.sqrt(in_features)) if scale is None else scale
    w = jax.random.uniform(kw, (out_features, in_features), jnp.float32, -bound, bound)
    b = jax.random.uniform(kb, (out_features,), jnp.float32, -bound, bound)
    return w, b


def build_made_params(key):
    """Builds pre-masked (out, in) weights + biases.

    Returns:
      raw_params: list of (w_masked(out,in), b(out,)) for the pure-JAX reference.
      w_slab:     (6, HIDDEN, HIDDEN) packed weight slab (zero-padded where in/out < HIDDEN).
      b_slab:     (HIDDEN, 8) packed bias slab, column j = bias of layer j (cols 6,7 zero).
    """
    keys = jax.random.split(key, 2 + 2 * NUM_BLOCKS)

    raw_params = []
    in_deg = _get_input_degrees(FEATURES)

    # initial layer: (FEATURES -> HIDDEN)
    m0, deg0 = _hidden_mask_and_degrees(in_deg, HIDDEN, FEATURES)
    w0, b0 = _linear_init(keys[0], HIDDEN, FEATURES)
    raw_params.append((w0 * m0, b0))

    prev_deg = deg0
    for blk in range(NUM_BLOCKS):
        # MaskedResidualBlock: two hidden MaskedLinears (HIDDEN -> HIDDEN)
        ma, dega = _hidden_mask_and_degrees(prev_deg, HIDDEN, FEATURES)
        wa, ba = _linear_init(keys[1 + 2 * blk], HIDDEN, HIDDEN)
        raw_params.append((wa * ma, ba))

        mb, degb = _hidden_mask_and_degrees(dega, HIDDEN, FEATURES)
        # zero_initialization=True: last linear of the block uses uniform(-1e-3, 1e-3)
        wb, bb = _linear_init(keys[2 + 2 * blk], HIDDEN, HIDDEN, scale=1e-3)
        raw_params.append((wb * mb, bb))
        prev_deg = degb

    # final layer: (HIDDEN -> FEATURES * OUTPUT_MULT), is_output
    mf, _ = _output_mask_and_degrees(prev_deg, OUT_FEATURES, FEATURES)
    wf, bf = _linear_init(keys[-1], OUT_FEATURES, HIDDEN)
    raw_params.append((wf * mf, bf))

    # ---- pack into two contiguous VMEM-friendly slabs ----
    w_slab = jnp.zeros((6, HIDDEN, HIDDEN), jnp.float32)
    w_slab = w_slab.at[0, :, :FEATURES].set(raw_params[0][0])        # (H, F)
    w_slab = w_slab.at[1].set(raw_params[1][0])                      # (H, H)
    w_slab = w_slab.at[2].set(raw_params[2][0])
    w_slab = w_slab.at[3].set(raw_params[3][0])
    w_slab = w_slab.at[4].set(raw_params[4][0])
    w_slab = w_slab.at[5, :OUT_FEATURES, :].set(raw_params[5][0])    # (F, H)

    b_slab = jnp.zeros((HIDDEN, 8), jnp.float32)
    for j in range(5):
        b_slab = b_slab.at[:, j].set(raw_params[j][1])
    b_slab = b_slab.at[:OUT_FEATURES, 5].set(raw_params[5][1])

    return raw_params, w_slab, b_slab


# ----------------------------- Pallas kernel ---------------------------------------

def made_kernel(x_ref, w_ref, b_ref, o_ref):
    # x_ref: (tile_b, FEATURES)  -- batch-major, straight from HBM (no wrapper transpose)
    # w_ref: (6, HIDDEN, HIDDEN) -- packed, pre-masked weights (VMEM-resident)
    # b_ref: (HIDDEN, 8)         -- packed biases, one column per layer (VMEM-resident)
    # o_ref: (OUT_FEATURES, tile_b) -- batch on lanes -> lane-dense unmasked stores
    x = x_ref[...]
    b = b_ref[...]          # hoisted single bias load; slice columns from vregs below

    # Initial MaskedLinear: W0(H,F) contracted with x(tile_b,F) on F -> (H, tile_b).
    # Contracting on x's LAST dim lets Mosaic do the tiny 8-row transpose in-kernel
    # on the XLU instead of a separate wrapper-side XLA transpose + pad.
    h = jax.lax.dot_general(
        w_ref[0, :, :FEATURES], x,
        dimension_numbers=(((1,), (1,)), ((), ())),
        preferred_element_type=jnp.float32) + b[:, 0:1]

    # residual block 1
    t = jnp.maximum(h, 0.0)
    t = jnp.dot(w_ref[1], t, preferred_element_type=jnp.float32) + b[:, 1:2]
    t = jnp.maximum(t, 0.0)
    t = jnp.dot(w_ref[2], t, preferred_element_type=jnp.float32) + b[:, 2:3]
    h = h + t

    # residual block 2
    t = jnp.maximum(h, 0.0)
    t = jnp.dot(w_ref[3], t, preferred_element_type=jnp.float32) + b[:, 3:4]
    t = jnp.maximum(t, 0.0)
    t = jnp.dot(w_ref[4], t, preferred_element_type=jnp.float32) + b[:, 4:5]
    h = h + t

    # final MaskedLinear (is_output): (F, H) @ (H, tile_b) -> lane-dense (F, tile_b)
    o_ref[...] = (jnp.dot(w_ref[5, :OUT_FEATURES, :], h,
                          preferred_element_type=jnp.float32)
                  + b[:OUT_FEATURES, 5:6]).astype(o_ref.dtype)


def made_forward(x, w_slab, b_slab, max_grid_steps=MAX_GRID_STEPS):
    """x: (B, FEATURES) -> (B, OUT_FEATURES).

    At most `max_grid_steps` lane-aligned batch tiles (2 -> one per TC on v7x;
    pass 1 on single-TC v5e/v6e to shave one ~0.35us grid-step overhead).
    """
    bsz = x.shape[0]
    lane = 128
    tile_b = max(lane, pl.cdiv(bsz, max_grid_steps * lane) * lane)   # multiple of 128
    n_tiles = pl.cdiv(bsz, tile_b)
    bp = n_tiles * tile_b
    if bp != bsz:
        # only needed when the batch is not tile-aligned (not hit in the demo)
        x = jnp.pad(x, ((0, bp - bsz), (0, 0)))

    out_t = pl.pallas_call(
        made_kernel,
        out_shape=jax.ShapeDtypeStruct((OUT_FEATURES, bp), jnp.float32),
        grid_spec=pltpu.PrefetchScalarGridSpec(
            num_scalar_prefetch=0,
            grid=(n_tiles,),
            in_specs=[
                # pipelined batch-major activation tile (last dim = full extent 8)
                pl.BlockSpec((tile_b, FEATURES), lambda i: (i, 0)),
                # packed weights / biases: constant index_map -> VMEM-resident
                pl.BlockSpec((6, HIDDEN, HIDDEN), lambda i: (0, 0, 0)),
                pl.BlockSpec((HIDDEN, 8), lambda i: (0, 0)),
            ],
            out_specs=pl.BlockSpec((OUT_FEATURES, tile_b), lambda i: (0, i)),
        ),
        compiler_params=pltpu.CompilerParams(
            dimension_semantics=("parallel",),   # both TCs on v7x
        ),
    )(x, w_slab, b_slab)

    # Module API is (batch, features); layout-aware callers could consume the
    # lane-dense (OUT_FEATURES, B) slab directly and skip this final transpose.
    return out_t[:, :bsz].T


# ----------------------------- pure-JAX reference (for sanity check) ---------------

def made_reference(x, raw_params):
    (w0, b0), (w1a, b1a), (w1b, b1b), (w2a, b2a), (w2b, b2b), (wf, bf) = raw_params
    h = x @ w0.T + b0
    for (wa, ba, wb, bb) in [(w1a, b1a, w1b, b1b), (w2a, b2a, w2b, b2b)]:
        t = jnp.maximum(h, 0.0) @ wa.T + ba
        t = jnp.maximum(t, 0.0) @ wb.T + bb
        h = h + t
    return h @ wf.T + bf


# ----------------------------- main -------------------------------------------------

if __name__ == "__main__":
    key = jax.random.PRNGKey(0)
    kx, kp = jax.random.split(key)
    x = jax.random.normal(kx, (BATCH, FEATURES), dtype=jnp.float32)
    raw_params, w_slab, b_slab = build_made_params(kp)

    out = made_forward(x, w_slab, b_slab)
    out = jax.block_until_ready(out)

    ref = made_reference(x, raw_params)
    assert out.shape == (BATCH, OUT_FEATURES)
    assert jnp.allclose(out, ref, atol=1e-4, rtol=1e-4), float(jnp.max(jnp.abs(out - ref)))

    print("KERNEL_OK")
</pallas_src>

<mosaic_0001>
module attributes {stable_mosaic.version = 11 : i64} {
  func.func @made_kernel(%arg0: i32, %arg1: memref<512x8xf32, #tpu.memory_space<vmem>>, %arg2: memref<6x32x32xf32, #tpu.memory_space<vmem>>, %arg3: memref<32x8xf32, #tpu.memory_space<vmem>>, %arg4: memref<8x512xf32, #tpu.memory_space<vmem>>) attributes {dimension_semantics = [#tpu.dimension_semantics<parallel>], iteration_bounds = array<i64: 2>, scalar_prefetch = 0 : i64, scratch_operands = 0 : i64, tpu.core_type = #tpu.core_type<tc>, window_params = [{transform_indices = @transform_0, window_bounds = array<i64: 512, 8>}, {pipeline_mode = #tpu.pipeline_mode<synchronous>, transform_indices = @transform_1, window_bounds = array<i64: 6, 32, 32>}, {pipeline_mode = #tpu.pipeline_mode<synchronous>, transform_indices = @transform_2, window_bounds = array<i64: 32, 8>}, {transform_indices = @transform_3, window_bounds = array<i64: 8, 512>}]} {
    %c0 = arith.constant 0 : index
    %c0_0 = arith.constant 0 : index
    %0 = vector.load %arg1[%c0, %c0_0] : memref<512x8xf32, #tpu.memory_space<vmem>>, vector<512x8xf32>
    %c0_1 = arith.constant 0 : index
    %c0_2 = arith.constant 0 : index
    %1 = vector.load %arg3[%c0_1, %c0_2] : memref<32x8xf32, #tpu.memory_space<vmem>>, vector<32x8xf32>
    %c0_3 = arith.constant 0 : index
    %c0_4 = arith.constant 0 : index
    %c0_5 = arith.constant 0 : index
    %2 = vector.load %arg2[%c0_3, %c0_4, %c0_5] : memref<6x32x32xf32, #tpu.memory_space<vmem>>, vector<1x32x8xf32>
    %3 = vector.shape_cast %2 : vector<1x32x8xf32> to vector<32x8xf32>
    %cst = arith.constant dense<0.000000e+00> : vector<32x512xf32>
    %4 = tpu.matmul %3, %0, %cst {dimension_numbers = #tpu.dot_dimension_numbers<[1], [1], [0], [0], [0, 0, 1, 0], [], []>} : vector<32x8xf32>, vector<512x8xf32>, vector<32x512xf32> -> vector<32x512xf32>
    %5 = vector.extract_strided_slice %1 {offsets = [0, 0], sizes = [32, 1], strides = [1, 1]} : vector<32x8xf32> to vector<32x1xf32>
    %6 = vector.broadcast %5 : vector<32x1xf32> to vector<32x512xf32>
    %7 = arith.addf %4, %6 : vector<32x512xf32>
    %cst_6 = arith.constant 0.000000e+00 : f32
    %8 = vector.broadcast %cst_6 : f32 to vector<32x512xf32>
    %9 = arith.maximumf %7, %8 : vector<32x512xf32>
    %c1 = arith.constant 1 : index
    %c0_7 = arith.constant 0 : index
    %c0_8 = arith.constant 0 : index
    %10 = vector.load %arg2[%c1, %c0_7, %c0_8] : memref<6x32x32xf32, #tpu.memory_space<vmem>>, vector<1x32x32xf32>
    %11 = vector.shape_cast %10 : vector<1x32x32xf32> to vector<32x32xf32>
    %cst_9 = arith.constant dense<0.000000e+00> : vector<32x512xf32>
    %12 = tpu.matmul %11, %9, %cst_9 {dimension_numbers = #tpu.dot_dimension_numbers<[1], [0], [0], [1], [0, 0, 1, 1], [], []>} : vector<32x32xf32>, vector<32x512xf32>, vector<32x512xf32> -> vector<32x512xf32>
    %13 = vector.extract_strided_slice %1 {offsets = [0, 1], sizes = [32, 1], strides = [1, 1]} : vector<32x8xf32> to vector<32x1xf32>
    %14 = vector.broadcast %13 : vector<32x1xf32> to vector<32x512xf32>
    %15 = arith.addf %12, %14 : vector<32x512xf32>
    %cst_10 = arith.constant 0.000000e+00 : f32
    %16 = vector.broadcast %cst_10 : f32 to vector<32x512xf32>
    %17 = arith.maximumf %15, %16 : vector<32x512xf32>
    %c2 = arith.constant 2 : index
    %c0_11 = arith.constant 0 : index
    %c0_12 = arith.constant 0 : index
    %18 = vector.load %arg2[%c2, %c0_11, %c0_12] : memref<6x32x32xf32, #tpu.memory_space<vmem>>, vector<1x32x32xf32>
    %19 = vector.shape_cast %18 : vector<1x32x32xf32> to vector<32x32xf32>
    %cst_13 = arith.constant dense<0.000000e+00> : vector<32x512xf32>
    %20 = tpu.matmul %19, %17, %cst_13 {dimension_numbers = #tpu.dot_dimension_numbers<[1], [0], [0], [1], [0, 0, 1, 1], [], []>} : vector<32x32xf32>, vector<32x512xf32>, vector<32x512xf32> -> vector<32x512xf32>
    %21 = vector.extract_strided_slice %1 {offsets = [0, 2], sizes = [32, 1], strides = [1, 1]} : vector<32x8xf32> to vector<32x1xf32>
    %22 = vector.broadcast %21 : vector<32x1xf32> to vector<32x512xf32>
    %23 = arith.addf %20, %22 : vector<32x512xf32>
    %24 = arith.addf %7, %23 : vector<32x512xf32>
    %cst_14 = arith.constant 0.000000e+00 : f32
    %25 = vector.broadcast %cst_14 : f32 to vector<32x512xf32>
    %26 = arith.maximumf %24, %25 : vector<32x512xf32>
    %c3 = arith.constant 3 : index
    %c0_15 = arith.constant 0 : index
    %c0_16 = arith.constant 0 : index
    %27 = vector.load %arg2[%c3, %c0_15, %c0_16] : memref<6x32x32xf32, #tpu.memory_space<vmem>>, vector<1x32x32xf32>
    %28 = vector.shape_cast %27 : vector<1x32x32xf32> to vector<32x32xf32>
    %cst_17 = arith.constant dense<0.000000e+00> : vector<32x512xf32>
    %29 = tpu.matmul %28, %26, %cst_17 {dimension_numbers = #tpu.dot_dimension_numbers<[1], [0], [0], [1], [0, 0, 1, 1], [], []>} : vector<32x32xf32>, vector<32x512xf32>, vector<32x512xf32> -> vector<32x512xf32>
    %30 = vector.extract_strided_slice %1 {offsets = [0, 3], sizes = [32, 1], strides = [1, 1]} : vector<32x8xf32> to vector<32x1xf32>
    %31 = vector.broadcast %30 : vector<32x1xf32> to vector<32x512xf32>
    %32 = arith.addf %29, %31 : vector<32x512xf32>
    %cst_18 = arith.constant 0.000000e+00 : f32
    %33 = vector.broadcast %cst_18 : f32 to vector<32x512xf32>
    %34 = arith.maximumf %32, %33 : vector<32x512xf32>
    %c4 = arith.constant 4 : index
    %c0_19 = arith.constant 0 : index
    %c0_20 = arith.constant 0 : index
    %35 = vector.load %arg2[%c4, %c0_19, %c0_20] : memref<6x32x32xf32, #tpu.memory_space<vmem>>, vector<1x32x32xf32>
    %36 = vector.shape_cast %35 : vector<1x32x32xf32> to vector<32x32xf32>
    %cst_21 = arith.constant dense<0.000000e+00> : vector<32x512xf32>
    %37 = tpu.matmul %36, %34, %cst_21 {dimension_numbers = #tpu.dot_dimension_numbers<[1], [0], [0], [1], [0, 0, 1, 1], [], []>} : vector<32x32xf32>, vector<32x512xf32>, vector<32x512xf32> -> vector<32x512xf32>
    %38 = vector.extract_strided_slice %1 {offsets = [0, 4], sizes = [32, 1], strides = [1, 1]} : vector<32x8xf32> to vector<32x1xf32>
    %39 = vector.broadcast %38 : vector<32x1xf32> to vector<32x512xf32>
    %40 = arith.addf %37, %39 : vector<32x512xf32>
    %41 = arith.addf %24, %40 : vector<32x512xf32>
    %c5 = arith.constant 5 : index
    %c0_22 = arith.constant 0 : index
    %c0_23 = arith.constant 0 : index
    %42 = vector.load %arg2[%c5, %c0_22, %c0_23] : memref<6x32x32xf32, #tpu.memory_space<vmem>>, vector<1x8x32xf32>
    %43 = vector.shape_cast %42 : vector<1x8x32xf32> to vector<8x32xf32>
    %cst_24 = arith.constant dense<0.000000e+00> : vector<8x512xf32>
    %44 = tpu.matmul %43, %41, %cst_24 {dimension_numbers = #tpu.dot_dimension_numbers<[1], [0], [0], [1], [0, 0, 1, 1], [], []>} : vector<8x32xf32>, vector<32x512xf32>, vector<8x512xf32> -> vector<8x512xf32>
    %45 = vector.extract_strided_slice %1 {offsets = [0, 5], sizes = [8, 1], strides = [1, 1]} : vector<32x8xf32> to vector<8x1xf32>
    %46 = vector.broadcast %45 : vector<8x1xf32> to vector<8x512xf32>
    %47 = arith.addf %44, %46 : vector<8x512xf32>
    %c0_25 = arith.constant 0 : index
    %c0_26 = arith.constant 0 : index
    %48 = vector.load %arg4[%c0_25, %c0_26] : memref<8x512xf32, #tpu.memory_space<vmem>>, vector<8x512xf32>
    tpu.vector_store %arg4[%c0_25, %c0_26], %47 {strides = array<i32>} : memref<8x512xf32, #tpu.memory_space<vmem>>, vector<8x512xf32>,
    return
  }
  func.func @transform_0(%arg0: i32) -> (i32, i32) {
    %c0_i32 = arith.constant 0 : i32
    %c0_i32_0 = arith.constant 0 : i32
    return %arg0, %c0_i32 : i32, i32
  }
  func.func @transform_1(%arg0: i32) -> (i32, i32, i32) {
    %c0_i32 = arith.constant 0 : i32
    %c0_i32_0 = arith.constant 0 : i32
    %c0_i32_1 = arith.constant 0 : i32
    %c0_i32_2 = arith.constant 0 : i32
    return %c0_i32, %c0_i32_0, %c0_i32_1 : i32, i32, i32
  }
  func.func @transform_2(%arg0: i32) -> (i32, i32) {
    %c0_i32 = arith.constant 0 : i32
    %c0_i32_0 = arith.constant 0 : i32
    %c0_i32_1 = arith.constant 0 : i32
    return %c0_i32, %c0_i32_0 : i32, i32
  }
  func.func @transform_3(%arg0: i32) -> (i32, i32) {
    %c0_i32 = arith.constant 0 : i32
    %c0_i32_0 = arith.constant 0 : i32
    return %c0_i32, %arg0 : i32, i32
  }
}

</mosaic_0001>

<llo_original>
// kernel: tpu_custom_call.1
$region0: #{tpu_custom_call.1}
  #allocation0 [shape = 'u32[]', space=smem, size = 0x4, offset = 0x4, fixed_abs, tag = 'smem constant byte address 0x4 - core index']
  #allocation1 [shape = 'u32[72,128]{1,0:T(1,128)}', space=vmem, size = 0x9000, scoped, tag = 'internal scratch']
  %s0 = inlined_call_operand.vmem [shape: f32[1024,8], index: 0, kind: input, shape index: {}]
  %s1 = inlined_call_operand.vmem [shape: f32[6,32,32], index: 1, kind: input, shape index: {}]
  %s2 = inlined_call_operand.vmem [shape: f32[32,8], index: 2, kind: input, shape index: {}]
  %s3 = inlined_call_operand.hbm [shape: f32[8,1024], index: 3, kind: output, shape index: {}]
  %s4 = sld [smem:[#allocation0]]
  $region45: #{tpu_custom_call.1} parent=0
    _
  %s6 = ssub.s32 1, %s4
  %s7 = scalar_select 0, %s6, %s4
  $region1: #{tpu_custom_call.1} parent=0
    #allocation2 [shape = 'u8[32768]{0}', space=vmem, size = 0x8000, scoped, tag = 'output window, operand 0']
    #allocation3 [shape = 's32[2]{0}', space=sflag, size = 0x8, scoped, tag = 'scoped memory for tpu_custom_call.1']
    %8 = vsyncpa [#allocation3], 0
    %s9 = scalar_lea.sflag [#allocation3], 1
    %10 = vsyncpa %s9, 0
    loop: start=0, step=1, limit=4
    $region2: #{tpu_custom_call.1} parent=1 // loop_pre_header
      _
    $region3: #{tpu_custom_call.1} parent=1 // loop_header
      %s12 = sphi 0, %s16
      %p13 = scmp.ge.s32.totalorder %s12, 4
      %s22 = sphi 0, %s24
      %s25 = sphi 0, %s22
      %s26 = sphi 0, %s25
      %s42 = sphi 0, %s26
      %s46 = sphi 0, %s46
      %s48 = sphi 0, %s46
      %s49 = sphi 0, %s48
      %s63 = sphi 0, %s49
      %s67 = sphi 0, %s67
      %s69 = sphi 0, %s67
      %s70 = sphi 0, %s69
      %s84 = sphi 0, %s70
      %s90 = sphi 0, %s92
      %s93 = sphi 0, %s90
      %s94 = sphi 0, %s93
      %s110 = sphi 0, %s94
    $region4: #{tpu_custom_call.1} parent=1 // loop_header_branch
      %15 = sbr.rel (%p13) target = $region8
    $region5: #{tpu_custom_call.1} parent=1 // loop_body
      %s17 = ssub.s32 %s12, 1
      %s18 = ssub.s32 %s12, 2
      %s19 = sadd.s32 %s12, 1
      %s20 = ssub.s32 %s12, %s19
      %p21 = scmp.eq.s32.totalorder %s20, 0
      %s23 = sadd.s32 %s22, 1
      %s24 = scalar_select %p21, %s22, %s23
      %p27 = pneg %p21
      %p28 = scmp.eq.s32.totalorder %s12, 1
      %p29 = por %p27, %p28
      %p30 = scmp.ne.s32.totalorder %s22, %s25
      %p31 = scmp.eq.s32.totalorder %s12, 0
      %p32 = por %p30, %p31
      %p33 = scmp.ne.s32.totalorder %s22, %s25
      %p34 = scmp.eq.s32.totalorder %s17, 1
      %p35 = por %p33, %p34
      %p36 = scmp.ne.s32.totalorder %s25, %s26
      %p37 = scmp.eq.s32.totalorder %s17, 0
      %p38 = por %p36, %p37
      %p39 = scmp.ne.s32.totalorder %s25, %s26
      %p40 = scmp.eq.s32.totalorder %s18, 1
      %p41 = por %p39, %p40
      %p43 = scmp.ne.s32.totalorder %s26, %s42
      %p44 = scmp.eq.s32.totalorder %s18, 0
      %p45 = por %p43, %p44
      %s47 = sadd.s32 %s46, 1
      %p50 = scmp.eq.s32.totalorder %s12, 1
      %p51 = scmp.ne.s32.totalorder %s46, %s48
      %p52 = scmp.eq.s32.totalorder %s12, 0
      %p53 = por %p51, %p52
      %p54 = scmp.ne.s32.totalorder %s46, %s48
      %p55 = scmp.eq.s32.totalorder %s17, 1
      %p56 = por %p54, %p55
      %p57 = scmp.ne.s32.totalorder %s48, %s49
      %p58 = scmp.eq.s32.totalorder %s17, 0
      %p59 = por %p57, %p58
      %p60 = scmp.ne.s32.totalorder %s48, %s49
      %p61 = scmp.eq.s32.totalorder %s18, 1
      %p62 = por %p60, %p61
      %p64 = scmp.ne.s32.totalorder %s49, %s63
      %p65 = scmp.eq.s32.totalorder %s18, 0
      %p66 = por %p64, %p65
      %s68 = sadd.s32 %s67, 1
      %p71 = scmp.eq.s32.totalorder %s12, 1
      %p72 = scmp.ne.s32.totalorder %s67, %s69
      %p73 = scmp.eq.s32.totalorder %s12, 0
      %p74 = por %p72, %p73
      %p75 = scmp.ne.s32.totalorder %s67, %s69
      %p76 = scmp.eq.s32.totalorder %s17, 1
      %p77 = por %p75, %p76
      %p78 = scmp.ne.s32.totalorder %s69, %s70
      %p79 = scmp.eq.s32.totalorder %s17, 0
      %p80 = por %p78, %p79
      %p81 = scmp.ne.s32.totalorder %s69, %s70
      %p82 = scmp.eq.s32.totalorder %s18, 1
      %p83 = por %p81, %p82
      %p85 = scmp.ne.s32.totalorder %s70, %s84
      %p86 = scmp.eq.s32.totalorder %s18, 0
      %p87 = por %p85, %p86
      %s88 = ssub.s32 %s12, %s19
      %p89 = scmp.eq.s32.totalorder %s88, 0
      %s91 = sadd.s32 %s90, 1
      %s92 = scalar_select %p89, %s90, %s91
      %p95 = pneg %p89
      %p96 = scmp.eq.s32.totalorder %s12, 1
      %p97 = por %p95, %p96
      %p98 = scmp.ne.s32.totalorder %s90, %s93
      %p99 = scmp.eq.s32.totalorder %s12, 0
      %p100 = por %p98, %p99
      %p101 = scmp.ne.s32.totalorder %s90, %s93
      %p102 = scmp.eq.s32.totalorder %s17, 1
      %p103 = por %p101, %p102
      %p104 = scmp.ne.s32.totalorder %s93, %s94
      %p105 = scmp.eq.s32.totalorder %s17, 0
      %p106 = por %p104, %p105
      %p107 = scmp.ne.s32.totalorder %s93, %s94
      %p108 = scmp.eq.s32.totalorder %s18, 1
      %p109 = por %p107, %p108
      %p111 = scmp.ne.s32.totalorder %s94, %s110
      %p112 = scmp.eq.s32.totalorder %s18, 0
      %p113 = por %p111, %p112
      %p114 = scmp.le.s32.totalorder 1, %s12
      %p115 = scmp.lt.s32.totalorder %s12, 3
      %p116 = pnand %p114, %p115
      %p117 = pneg %p116
      // Predicated region
      $region9: #{tpu_custom_call.1} parent=5 // pred_check
        _
      $region10: #{tpu_custom_call.1} parent=5 // pred_check_branch
        %119 = sbr.rel (%p116) target = $region12
      $region11: #{tpu_custom_call.1} parent=5 // pred_region
        %s120 = ssub.s32 %s12, 1
        // Predicated region
        $region13: #{tpu_custom_call.1} parent=11 // pred_check
          %p121 = pneg %p59
        $region14: #{tpu_custom_call.1} parent=11 // pred_check_branch
          %123 = sbr.rel (%p121) target = $region16
        $region15: #{tpu_custom_call.1} parent=11 // pred_region
          _
        $region16: #{tpu_custom_call.1} parent=11 // pred_fallthru
          _
        // Predicated region
        $region17: #{tpu_custom_call.1} parent=11 // pred_check
          %p124 = pneg %p80
        $region18: #{tpu_custom_call.1} parent=11 // pred_check_branch
          %126 = sbr.rel (%p124) target = $region20
        $region19: #{tpu_custom_call.1} parent=11 // pred_region
          _
        $region20: #{tpu_custom_call.1} parent=11 // pred_fallthru
          _
      $region12: #{tpu_custom_call.1} parent=5 // pred_fallthru
        _
      %p127 = scmp.lt.s32.totalorder %s12, 2
      // Predicated region
      $region21: #{tpu_custom_call.1} parent=5 // pred_check
        %p128 = pneg %p127
      $region22: #{tpu_custom_call.1} parent=5 // pred_check_branch
        %130 = sbr.rel (%p128) target = $region24
      $region23: #{tpu_custom_call.1} parent=5 // pred_region
        // Predicated region
        $region25: #{tpu_custom_call.1} parent=23 // pred_check
          %p131 = pneg %p32
        $region26: #{tpu_custom_call.1} parent=23 // pred_check_branch
          %133 = sbr.rel (%p131) target = $region28
        $region27: #{tpu_custom_call.1} parent=23 // pred_region
          %s134 = smul.u32 64, %s12
          %p135 = scmp.lt.s32.totalorder %s134, 127
          %s136 = scalar_select %p135, %s134, 127
          %s137 = smul.addr %s136, 8
          %s138 = scalar_lea.vmem %s0, %s137
          %s139 = smul.u32 64, %s12
        $region28: #{tpu_custom_call.1} parent=23 // pred_fallthru
          _
      $region24: #{tpu_custom_call.1} parent=5 // pred_fallthru
        _
      %p140 = scmp.le.s32.totalorder 1, %s12
      %p141 = scmp.lt.s32.totalorder %s12, 3
      %p142 = pnand %p140, %p141
      %p143 = pneg %p142
      // Predicated region
      $region29: #{tpu_custom_call.1} parent=5 // pred_check
        _
      $region30: #{tpu_custom_call.1} parent=5 // pred_check_branch
        %145 = sbr.rel (%p142) target = $region32
      $region31: #{tpu_custom_call.1} parent=5 // pred_region
        %s146 = ssub.s32 %s12, 1
        %s147 = smul.u32 64, %s17
        %p148 = scmp.lt.s32.totalorder %s147, 127
        %s149 = scalar_select %p148, %s147, 127
        %s150 = smul.addr %s149, 8
        %s151 = scalar_lea.vmem %s0, %s150
        %p152 = pneg %p38
        %p153 = pneg %p35
        %p154 = pneg %p59
        %p155 = pneg %p56
        %p156 = pneg %p80
        %p157 = pneg %p77
        %p158 = pneg %p106
        %p159 = pneg %p103
        %s160 = sand.u32 %s93, 1
        %s161 = scalar_lea.sflag [#allocation3], %s160
        %s162 = sand.u32 %s93, 1
        %s163 = smul.addr %s162, 32
        %s164 = scalar_lea.vmem [#allocation2], %s163
        %s165 = smul.u32 64, %s17
        %p166 = scmp.lt.s32.totalorder %s165, 127
        %s167 = scalar_select %p166, %s165, 127
        %s168 = smul.addr %s167, 8
        %s169 = scalar_lea.vmem %s0, %s168
        %s170 = smul.u32 64, %s17
        %s171 = smul.u32 4, %s17
        %v172 = vld [vmem:[%s169] sm:$0xff]
        %v173 = vld [vmem:[%s169 + $0x8] sm:$0xff]
        %v174 = vld [vmem:[%s169 + $0x10] sm:$0xff]
        %v175 = vld [vmem:[%s169 + $0x18] sm:$0xff]
        %v176 = vld [vmem:[%s169 + $0x20] sm:$0xff]
        %v177 = vld [vmem:[%s169 + $0x28] sm:$0xff]
        %v178 = vld [vmem:[%s169 + $0x30] sm:$0xff]
        %v179 = vld [vmem:[%s169 + $0x38] sm:$0xff]
        %v180 = vld [vmem:[%s169 + $0x40] sm:$0xff]
        %v181 = vld [vmem:[%s169 + $0x48] sm:$0xff]
        %v182 = vld [vmem:[%s169 + $0x50] sm:$0xff]
        %v183 = vld [vmem:[%s169 + $0x58] sm:$0xff]
        %v184 = vld [vmem:[%s169 + $0x60] sm:$0xff]
        %v185 = vld [vmem:[%s169 + $0x68] sm:$0xff]
        %v186 = vld [vmem:[%s169 + $0x70] sm:$0xff]
        %v187 = vld [vmem:[%s169 + $0x78] sm:$0xff]
        %v188 = vld [vmem:[%s169 + $0x80] sm:$0xff]
        %v189 = vld [vmem:[%s169 + $0x88] sm:$0xff]
        %v190 = vld [vmem:[%s169 + $0x90] sm:$0xff]
        %v191 = vld [vmem:[%s169 + $0x98] sm:$0xff]
        %v192 = vld [vmem:[%s169 + $0xa0] sm:$0xff]
        %v193 = vld [vmem:[%s169 + $0xa8] sm:$0xff]
        %v194 = vld [vmem:[%s169 + $0xb0] sm:$0xff]
        %v195 = vld [vmem:[%s169 + $0xb8] sm:$0xff]
        %v196 = vld [vmem:[%s169 + $0xc0] sm:$0xff]
        %v197 = vld [vmem:[%s169 + $0xc8] sm:$0xff]
        %v198 = vld [vmem:[%s169 + $0xd0] sm:$0xff]
        %v199 = vld [vmem:[%s169 + $0xd8] sm:$0xff]
        %v200 = vld [vmem:[%s169 + $0xe0] sm:$0xff]
        %v201 = vld [vmem:[%s169 + $0xe8] sm:$0xff]
        %v202 = vld [vmem:[%s169 + $0xf0] sm:$0xff]
        %v203 = vld [vmem:[%s169 + $0xf8] sm:$0xff]
        %v204 = vld [vmem:[%s169 + $0x100] sm:$0xff]
        %v205 = vld [vmem:[%s169 + $0x108] sm:$0xff]
        %v206 = vld [vmem:[%s169 + $0x110] sm:$0xff]
        %v207 = vld [vmem:[%s169 + $0x118] sm:$0xff]
        %v208 = vld [vmem:[%s169 + $0x120] sm:$0xff]
        %v209 = vld [vmem:[%s169 + $0x128] sm:$0xff]
        %v210 = vld [vmem:[%s169 + $0x130] sm:$0xff]
        %v211 = vld [vmem:[%s169 + $0x138] sm:$0xff]
        %v212 = vld [vmem:[%s169 + $0x140] sm:$0xff]
        %v213 = vld [vmem:[%s169 + $0x148] sm:$0xff]
        %v214 = vld [vmem:[%s169 + $0x150] sm:$0xff]
        %v215 = vld [vmem:[%s169 + $0x158] sm:$0xff]
        %v216 = vld [vmem:[%s169 + $0x160] sm:$0xff]
        %v217 = vld [vmem:[%s169 + $0x168] sm:$0xff]
        %v218 = vld [vmem:[%s169 + $0x170] sm:$0xff]
        %v219 = vld [vmem:[%s169 + $0x178] sm:$0xff]
        %v220 = vld [vmem:[%s169 + $0x180] sm:$0xff]
        %v221 = vld [vmem:[%s169 + $0x188] sm:$0xff]
        %v222 = vld [vmem:[%s169 + $0x190] sm:$0xff]
        %v223 = vld [vmem:[%s169 + $0x198] sm:$0xff]
        %v224 = vld [vmem:[%s169 + $0x1a0] sm:$0xff]
        %v225 = vld [vmem:[%s169 + $0x1a8] sm:$0xff]
        %v226 = vld [vmem:[%s169 + $0x1b0] sm:$0xff]
        %v227 = vld [vmem:[%s169 + $0x1b8] sm:$0xff]
        %v228 = vld [vmem:[%s169 + $0x1c0] sm:$0xff]
        %v229 = vld [vmem:[%s169 + $0x1c8] sm:$0xff]
        %v230 = vld [vmem:[%s169 + $0x1d0] sm:$0xff]
        %v231 = vld [vmem:[%s169 + $0x1d8] sm:$0xff]
        %v232 = vld [vmem:[%s169 + $0x1e0] sm:$0xff]
        %v233 = vld [vmem:[%s169 + $0x1e8] sm:$0xff]
        %v234 = vld [vmem:[%s169 + $0x1f0] sm:$0xff]
        %v235 = vld [vmem:[%s169 + $0x1f8] sm:$0xff]
        %v236 = vld [vmem:[%s2] sm:$0xff]
        %v237 = vld [vmem:[%s2 + $0x8] sm:$0xff]
        %v238 = vld [vmem:[%s2 + $0x10] sm:$0xff]
        %v239 = vld [vmem:[%s2 + $0x18] sm:$0xff]
        %v240 = vld [vmem:[%s1] sm:$0xff]
        %v241 = vld [vmem:[%s1 + $0x8] sm:$0xff]
        %v242 = vld [vmem:[%s1 + $0x10] sm:$0xff]
        %v243 = vld [vmem:[%s1 + $0x18] sm:$0xff]
        %245 = vset.pattern.permute.xlu0 0
        %246 = vperm.xlu0 %245, %v236
        %v247 = vpop.permute.xlu0 %246
        %250 = vset.pattern.permute.xlu0 0
        %251 = vperm.xlu0 %250, %v237
        %v252 = vpop.permute.xlu0 %251
        %255 = vset.pattern.permute.xlu0 0
        %256 = vperm.xlu0 %255, %v238
        %v257 = vpop.permute.xlu0 %256
        %260 = vset.pattern.permute.xlu0 0
        %261 = vperm.xlu0 %260, %v239
        %v262 = vpop.permute.xlu0 %261
        %vm264 = vcmask 64512
        %v266 = vsel %vm264, %v240, 0
        %v269 = vsel %vm264, %v241, 0
        %v272 = vsel %vm264, %v242, 0
        %v275 = vsel %vm264, %v243, 0
        %v278 = vsel %vm264, %v172, 0
        %v281 = vsel %vm264, %v173, 0
        %v284 = vsel %vm264, %v174, 0
        %v287 = vsel %vm264, %v175, 0
        %v290 = vsel %vm264, %v176, 0
        %v293 = vsel %vm264, %v177, 0
        %v296 = vsel %vm264, %v178, 0
        %v299 = vsel %vm264, %v179, 0
        %v302 = vsel %vm264, %v180, 0
        %v305 = vsel %vm264, %v181, 0
        %v308 = vsel %vm264, %v182, 0
        %v311 = vsel %vm264, %v183, 0
        %v314 = vsel %vm264, %v184, 0
        %v317 = vsel %vm264, %v185, 0
        %v320 = vsel %vm264, %v186, 0
        %v323 = vsel %vm264, %v187, 0
        %v326 = vsel %vm264, %v188, 0
        %v329 = vsel %vm264, %v189, 0
        %v332 = vsel %vm264, %v190, 0
        %v335 = vsel %vm264, %v191, 0
        %v338 = vsel %vm264, %v192, 0
        %v341 = vsel %vm264, %v193, 0
        %v344 = vsel %vm264, %v194, 0
        %v347 = vsel %vm264, %v195, 0
        %v350 = vsel %vm264, %v196, 0
        %v353 = vsel %vm264, %v197, 0
        %v356 = vsel %vm264, %v198, 0
        %v359 = vsel %vm264, %v199, 0
        %v362 = vsel %vm264, %v200, 0
        %v365 = vsel %vm264, %v201, 0
        %v368 = vsel %vm264, %v202, 0
        %v371 = vsel %vm264, %v203, 0
        %v374 = vsel %vm264, %v204, 0
        %v377 = vsel %vm264, %v205, 0
        %v380 = vsel %vm264, %v206, 0
        %v383 = vsel %vm264, %v207, 0
        %v386 = vsel %vm264, %v208, 0
        %v389 = vsel %vm264, %v209, 0
        %v392 = vsel %vm264, %v210, 0
        %v395 = vsel %vm264, %v211, 0
        %v398 = vsel %vm264, %v212, 0
        %v401 = vsel %vm264, %v213, 0
        %v404 = vsel %vm264, %v214, 0
        %v407 = vsel %vm264, %v215, 0
        %v410 = vsel %vm264, %v216, 0
        %v413 = vsel %vm264, %v217, 0
        %v416 = vsel %vm264, %v218, 0
        %v419 = vsel %vm264, %v219, 0
        %v422 = vsel %vm264, %v220, 0
        %v425 = vsel %vm264, %v221, 0
        %v428 = vsel %vm264, %v222, 0
        %v431 = vsel %vm264, %v223, 0
        %v434 = vsel %vm264, %v224, 0
        %v437 = vsel %vm264, %v225, 0
        %v440 = vsel %vm264, %v226, 0
        %v443 = vsel %vm264, %v227, 0
        %v446 = vsel %vm264, %v228, 0
        %v449 = vsel %vm264, %v229, 0
        %v452 = vsel %vm264, %v230, 0
        %v455 = vsel %vm264, %v231, 0
        %v458 = vsel %vm264, %v232, 0
        %v461 = vsel %vm264, %v233, 0
        %v464 = vsel %vm264, %v234, 0
        %v467 = vsel %vm264, %v235, 0
        %469 = vmatpush.xpose.msra.mxu0 %v323
        %470 = vmatpush.xpose.msra.mxu0 %v320
        %471 = vmatpush.xpose.msra.mxu0 %v317
        %472 = vmatpush.xpose.msra.mxu0 %v314
        %473 = vmatpush.xpose.msra.mxu0 %v311
        %474 = vmatpush.xpose.msra.mxu0 %v308
        %475 = vmatpush.xpose.msra.mxu0 %v305
        %476 = vmatpush.xpose.msra.mxu0 %v302
        %477 = vmatpush.xpose.msra.mxu0 %v299
        %478 = vmatpush.xpose.msra.mxu0 %v296
        %479 = vmatpush.xpose.msra.mxu0 %v293
        %480 = vmatpush.xpose.msra.mxu0 %v290
        %481 = vmatpush.xpose.msra.mxu0 %v287
        %482 = vmatpush.xpose.msra.mxu0 %v284
        %483 = vmatpush.xpose.msra.mxu0 %v281
        %484 = vmatpush.xpose.msra.mxu0 %v278
        %485 = vmatmul.f32.gmra.mxu0 %v266
        %v486 = vpop.f32.mrf.mxu0
        %v487 = vadd.f32 %v247, %v486
        %488 = vmatmul.f32.gmra.mxu0 %v269
        %v489 = vpop.f32.mrf.mxu0
        %v490 = vadd.f32 %v252, %v489
        %491 = vmatmul.f32.gmra.mxu0 %v272
        %v492 = vpop.f32.mrf.mxu0
        %v493 = vadd.f32 %v257, %v492
        %494 = vmatmul.f32.gmra.mxu0 %v275
        %v495 = vpop.f32.mrf.mxu0
        %v496 = vadd.f32 %v262, %v495
        %497 = vdwg.mxu0
        %498 = vmatpush.xpose.msra.mxu0 %v371
        %499 = vmatpush.xpose.msra.mxu0 %v368
        %500 = vmatpush.xpose.msra.mxu0 %v365
        %501 = vmatpush.xpose.msra.mxu0 %v362
        %502 = vmatpush.xpose.msra.mxu0 %v359
        %503 = vmatpush.xpose.msra.mxu0 %v356
        %504 = vmatpush.xpose.msra.mxu0 %v353
        %505 = vmatpush.xpose.msra.mxu0 %v350
        %506 = vmatpush.xpose.msra.mxu0 %v347
        %507 = vmatpush.xpose.msra.mxu0 %v344
        %508 = vmatpush.xpose.msra.mxu0 %v341
        %509 = vmatpush.xpose.msra.mxu0 %v338
        %510 = vmatpush.xpose.msra.mxu0 %v335
        %511 = vmatpush.xpose.msra.mxu0 %v332
        %512 = vmatpush.xpose.msra.mxu0 %v329
        %513 = vmatpush.xpose.msra.mxu0 %v326
        %514 = vmatmul.f32.gmra.mxu0 %v266
        %v515 = vpop.f32.mrf.mxu0
        %v516 = vadd.f32 %v247, %v515
        %517 = vmatmul.f32.gmra.mxu0 %v269
        %v518 = vpop.f32.mrf.mxu0
        %v519 = vadd.f32 %v252, %v518
        %520 = vmatmul.f32.gmra.mxu0 %v272
        %v521 = vpop.f32.mrf.mxu0
        %v522 = vadd.f32 %v257, %v521
        %523 = vmatmul.f32.gmra.mxu0 %v275
        %v524 = vpop.f32.mrf.mxu0
        %v525 = vadd.f32 %v262, %v524
        %526 = vdwg.mxu0
        %527 = vmatpush.xpose.msra.mxu0 %v419
        %528 = vmatpush.xpose.msra.mxu0 %v416
        %529 = vmatpush.xpose.msra.mxu0 %v413
        %530 = vmatpush.xpose.msra.mxu0 %v410
        %531 = vmatpush.xpose.msra.mxu0 %v407
        %532 = vmatpush.xpose.msra.mxu0 %v404
        %533 = vmatpush.xpose.msra.mxu0 %v401
        %534 = vmatpush.xpose.msra.mxu0 %v398
        %535 = vmatpush.xpose.msra.mxu0 %v395
        %536 = vmatpush.xpose.msra.mxu0 %v392
        %537 = vmatpush.xpose.msra.mxu0 %v389
        %538 = vmatpush.xpose.msra.mxu0 %v386
        %539 = vmatpush.xpose.msra.mxu0 %v383
        %540 = vmatpush.xpose.msra.mxu0 %v380
        %541 = vmatpush.xpose.msra.mxu0 %v377
        %542 = vmatpush.xpose.msra.mxu0 %v374
        %543 = vmatmul.f32.gmra.mxu0 %v266
        %v544 = vpop.f32.mrf.mxu0
        %v545 = vadd.f32 %v247, %v544
        %546 = vmatmul.f32.gmra.mxu0 %v269
        %v547 = vpop.f32.mrf.mxu0
        %v548 = vadd.f32 %v252, %v547
        %549 = vmatmul.f32.gmra.mxu0 %v272
        %v550 = vpop.f32.mrf.mxu0
        %v551 = vadd.f32 %v257, %v550
        %552 = vmatmul.f32.gmra.mxu0 %v275
        %v553 = vpop.f32.mrf.mxu0
        %v554 = vadd.f32 %v262, %v553
        %555 = vdwg.mxu0
        %556 = vmatpush.xpose.msra.mxu0 %v467
        %557 = vmatpush.xpose.msra.mxu0 %v464
        %558 = vmatpush.xpose.msra.mxu0 %v461
        %559 = vmatpush.xpose.msra.mxu0 %v458
        %560 = vmatpush.xpose.msra.mxu0 %v455
        %561 = vmatpush.xpose.msra.mxu0 %v452
        %562 = vmatpush.xpose.msra.mxu0 %v449
        %563 = vmatpush.xpose.msra.mxu0 %v446
        %564 = vmatpush.xpose.msra.mxu0 %v443
        %565 = vmatpush.xpose.msra.mxu0 %v440
        %566 = vmatpush.xpose.msra.mxu0 %v437
        %567 = vmatpush.xpose.msra.mxu0 %v434
        %568 = vmatpush.xpose.msra.mxu0 %v431
        %569 = vmatpush.xpose.msra.mxu0 %v428
        %570 = vmatpush.xpose.msra.mxu0 %v425
        %571 = vmatpush.xpose.msra.mxu0 %v422
        %572 = vmatmul.f32.gmra.mxu0 %v266
        %v573 = vpop.f32.mrf.mxu0
        %v574 = vadd.f32 %v247, %v573
        %575 = vmatmul.f32.gmra.mxu0 %v269
        %v576 = vpop.f32.mrf.mxu0
        %v577 = vadd.f32 %v252, %v576
        %578 = vmatmul.f32.gmra.mxu0 %v272
        %v579 = vpop.f32.mrf.mxu0
        %v580 = vadd.f32 %v257, %v579
        %581 = vmatmul.f32.gmra.mxu0 %v275
        %v582 = vpop.f32.mrf.mxu0
        %v583 = vadd.f32 %v262, %v582
        %584 = vdwg.mxu0
        %v585 = vmax.f32 %v487, 0.0
        %v586 = vmax.f32 %v516, 0.0
        %v587 = vmax.f32 %v545, 0.0
        %v588 = vmax.f32 %v574, 0.0
        %v589 = vmax.f32 %v490, 0.0
        %v590 = vmax.f32 %v519, 0.0
        %v591 = vmax.f32 %v548, 0.0
        %v592 = vmax.f32 %v577, 0.0
        %v593 = vmax.f32 %v493, 0.0
        %v594 = vmax.f32 %v522, 0.0
        %v595 = vmax.f32 %v551, 0.0
        %v596 = vmax.f32 %v580, 0.0
        %v597 = vmax.f32 %v496, 0.0
        %v598 = vmax.f32 %v525, 0.0
        %v599 = vmax.f32 %v554, 0.0
        %v600 = vmax.f32 %v583, 0.0
        %s601 = scalar_lea.vmem %s1, 32
        %v602 = vld [vmem:[%s601] sm:$0xff]
        %v603 = vld [vmem:[%s601 + $0x8] sm:$0xff]
        %v604 = vld [vmem:[%s601 + $0x10] sm:$0xff]
        %v605 = vld [vmem:[%s601 + $0x18] sm:$0xff]
        %606 = vset.pattern.permute.xlu0 1
        %607 = vperm.xlu0 %606, %v236
        %v608 = vpop.permute.xlu0 %607
        %610 = vset.pattern.permute.xlu0 1
        %611 = vperm.xlu0 %610, %v237
        %v612 = vpop.permute.xlu0 %611
        %614 = vset.pattern.permute.xlu0 1
        %615 = vperm.xlu0 %614, %v238
        %v616 = vpop.permute.xlu0 %615
        %618 = vset.pattern.permute.xlu0 1
        %619 = vperm.xlu0 %618, %v239
        %v620 = vpop.permute.xlu0 %619
        %vm622 = vcmask 261120
        %v624 = vsel %vm622, %v602, 0
        %v627 = vsel %vm622, %v603, 0
        %v630 = vsel %vm622, %v604, 0
        %v633 = vsel %vm622, %v605, 0
        %635 = vmatpush.msra.mxu0 0.0
        %636 = vmatpush.msra.mxu0 0.0
        %637 = vmatpush.msra.mxu0 0.0
        %638 = vmatpush.msra.mxu0 0.0
        %639 = vmatpush.msra.mxu0 0.0
        %640 = vmatpush.msra.mxu0 0.0
        %641 = vmatpush.msra.mxu0 0.0
        %642 = vmatpush.msra.mxu0 0.0
        %643 = vmatpush.msra.mxu0 0.0
        %644 = vmatpush.msra.mxu0 0.0
        %645 = vmatpush.msra.mxu0 0.0
        %646 = vmatpush.msra.mxu0 0.0
        %647 = vmatpush.msra.mxu0 %v597
        %648 = vmatpush.msra.mxu0 %v593
        %649 = vmatpush.msra.mxu0 %v589
        %650 = vmatpush.msra.mxu0 %v585
        %651 = vmatmul.f32.gmra.mxu0 %v624
        %v652 = vpop.f32.mrf.mxu0
        %v653 = vadd.f32 %v608, %v652
        %654 = vmatmul.f32.gmra.mxu0 %v627
        %v655 = vpop.f32.mrf.mxu0
        %v656 = vadd.f32 %v612, %v655
        %657 = vmatmul.f32.gmra.mxu0 %v630
        %v658 = vpop.f32.mrf.mxu0
        %v659 = vadd.f32 %v616, %v658
        %660 = vmatmul.f32.gmra.mxu0 %v633
        %v661 = vpop.f32.mrf.mxu0
        %v662 = vadd.f32 %v620, %v661
        %663 = vdwg.mxu0
        %664 = vmatpush.msra.mxu0 0.0
        %665 = vmatpush.msra.mxu0 0.0
        %666 = vmatpush.msra.mxu0 0.0
        %667 = vmatpush.msra.mxu0 0.0
        %668 = vmatpush.msra.mxu0 0.0
        %669 = vmatpush.msra.mxu0 0.0
        %670 = vmatpush.msra.mxu0 0.0
        %671 = vmatpush.msra.mxu0 0.0
        %672 = vmatpush.msra.mxu0 0.0
        %673 = vmatpush.msra.mxu0 0.0
        %674 = vmatpush.msra.mxu0 0.0
        %675 = vmatpush.msra.mxu0 0.0
        %676 = vmatpush.msra.mxu0 %v598
        %677 = vmatpush.msra.mxu0 %v594
        %678 = vmatpush.msra.mxu0 %v590
        %679 = vmatpush.msra.mxu0 %v586
        %680 = vmatmul.f32.gmra.mxu0 %v624
        %v681 = vpop.f32.mrf.mxu0
        %v682 = vadd.f32 %v608, %v681
        %683 = vmatmul.f32.gmra.mxu0 %v627
        %v684 = vpop.f32.mrf.mxu0
        %v685 = vadd.f32 %v612, %v684
        %686 = vmatmul.f32.gmra.mxu0 %v630
        %v687 = vpop.f32.mrf.mxu0
        %v688 = vadd.f32 %v616, %v687
        %689 = vmatmul.f32.gmra.mxu0 %v633
        %v690 = vpop.f32.mrf.mxu0
        %v691 = vadd.f32 %v620, %v690
        %692 = vdwg.mxu0
        %693 = vmatpush.msra.mxu0 0.0
        %694 = vmatpush.msra.mxu0 0.0
        %695 = vmatpush.msra.mxu0 0.0
        %696 = vmatpush.msra.mxu0 0.0
        %697 = vmatpush.msra.mxu0 0.0
        %698 = vmatpush.msra.mxu0 0.0
        %699 = vmatpush.msra.mxu0 0.0
        %700 = vmatpush.msra.mxu0 0.0
        %701 = vmatpush.msra.mxu0 0.0
        %702 = vmatpush.msra.mxu0 0.0
        %703 = vmatpush.msra.mxu0 0.0
        %704 = vmatpush.msra.mxu0 0.0
        %705 = vmatpush.msra.mxu0 %v599
        %706 = vmatpush.msra.mxu0 %v595
        %707 = vmatpush.msra.mxu0 %v591
        %708 = vmatpush.msra.mxu0 %v587
        %709 = vmatmul.f32.gmra.mxu0 %v624
        %v710 = vpop.f32.mrf.mxu0
        %v711 = vadd.f32 %v608, %v710
        %712 = vmatmul.f32.gmra.mxu0 %v627
        %v713 = vpop.f32.mrf.mxu0
        %v714 = vadd.f32 %v612, %v713
        %715 = vmatmul.f32.gmra.mxu0 %v630
        %v716 = vpop.f32.mrf.mxu0
        %v717 = vadd.f32 %v616, %v716
        %718 = vmatmul.f32.gmra.mxu0 %v633
        %v719 = vpop.f32.mrf.mxu0
        %v720 = vadd.f32 %v620, %v719
        %721 = vdwg.mxu0
        %722 = vmatpush.msra.mxu0 0.0
        %723 = vmatpush.msra.mxu0 0.0
        %724 = vmatpush.msra.mxu0 0.0
        %725 = vmatpush.msra.mxu0 0.0
        %726 = vmatpush.msra.mxu0 0.0
        %727 = vmatpush.msra.mxu0 0.0
        %728 = vmatpush.msra.mxu0 0.0
        %729 = vmatpush.msra.mxu0 0.0
        %730 = vmatpush.msra.mxu0 0.0
        %731 = vmatpush.msra.mxu0 0.0
        %732 = vmatpush.msra.mxu0 0.0
        %733 = vmatpush.msra.mxu0 0.0
        %734 = vmatpush.msra.mxu0 %v600
        %735 = vmatpush.msra.mxu0 %v596
        %736 = vmatpush.msra.mxu0 %v592
        %737 = vmatpush.msra.mxu0 %v588
        %738 = vmatmul.f32.gmra.mxu0 %v624
        %v739 = vpop.f32.mrf.mxu0
        %v740 = vadd.f32 %v608, %v739
        %741 = vmatmul.f32.gmra.mxu0 %v627
        %v742 = vpop.f32.mrf.mxu0
        %v743 = vadd.f32 %v612, %v742
        %744 = vmatmul.f32.gmra.mxu0 %v630
        %v745 = vpop.f32.mrf.mxu0
        %v746 = vadd.f32 %v616, %v745
        %747 = vmatmul.f32.gmra.mxu0 %v633
        %v748 = vpop.f32.mrf.mxu0
        %v749 = vadd.f32 %v620, %v748
        %750 = vdwg.mxu0
        %v751 = vmax.f32 %v653, 0.0
        %v752 = vmax.f32 %v682, 0.0
        %v753 = vmax.f32 %v711, 0.0
        %v754 = vmax.f32 %v740, 0.0
        %v755 = vmax.f32 %v656, 0.0
        %v756 = vmax.f32 %v685, 0.0
        %v757 = vmax.f32 %v714, 0.0
        %v758 = vmax.f32 %v743, 0.0
        %v759 = vmax.f32 %v659, 0.0
        %v760 = vmax.f32 %v688, 0.0
        %v761 = vmax.f32 %v717, 0.0
        %v762 = vmax.f32 %v746, 0.0
        %v763 = vmax.f32 %v662, 0.0
        %v764 = vmax.f32 %v691, 0.0
        %v765 = vmax.f32 %v720, 0.0
        %v766 = vmax.f32 %v749, 0.0
        %s767 = scalar_lea.vmem %s1, 64
        %v768 = vld [vmem:[%s767] sm:$0xff]
        %v769 = vld [vmem:[%s767 + $0x8] sm:$0xff]
        %v770 = vld [vmem:[%s767 + $0x10] sm:$0xff]
        %v771 = vld [vmem:[%s767 + $0x18] sm:$0xff]
        %772 = vset.pattern.permute.xlu0 2
        %773 = vperm.xlu0 %772, %v236
        %v774 = vpop.permute.xlu0 %773
        %776 = vset.pattern.permute.xlu0 2
        %777 = vperm.xlu0 %776, %v237
        %v778 = vpop.permute.xlu0 %777
        %780 = vset.pattern.permute.xlu0 2
        %781 = vperm.xlu0 %780, %v238
        %v782 = vpop.permute.xlu0 %781
        %784 = vset.pattern.permute.xlu0 2
        %785 = vperm.xlu0 %784, %v239
        %v786 = vpop.permute.xlu0 %785
        %v789 = vsel %vm622, %v768, 0
        %v792 = vsel %vm622, %v769, 0
        %v795 = vsel %vm622, %v770, 0
        %v798 = vsel %vm622, %v771, 0
        %800 = vmatpush.msra.mxu0 0.0
        %801 = vmatpush.msra.mxu0 0.0
        %802 = vmatpush.msra.mxu0 0.0
        %803 = vmatpush.msra.mxu0 0.0
        %804 = vmatpush.msra.mxu0 0.0
        %805 = vmatpush.msra.mxu0 0.0
        %806 = vmatpush.msra.mxu0 0.0
        %807 = vmatpush.msra.mxu0 0.0
        %808 = vmatpush.msra.mxu0 0.0
        %809 = vmatpush.msra.mxu0 0.0
        %810 = vmatpush.msra.mxu0 0.0
        %811 = vmatpush.msra.mxu0 0.0
        %812 = vmatpush.msra.mxu0 %v763
        %813 = vmatpush.msra.mxu0 %v759
        %814 = vmatpush.msra.mxu0 %v755
        %815 = vmatpush.msra.mxu0 %v751
        %816 = vmatmul.f32.gmra.mxu0 %v789
        %v817 = vpop.f32.mrf.mxu0
        %v818 = vadd.f32 %v774, %v817
        %819 = vmatmul.f32.gmra.mxu0 %v792
        %v820 = vpop.f32.mrf.mxu0
        %v821 = vadd.f32 %v778, %v820
        %822 = vmatmul.f32.gmra.mxu0 %v795
        %v823 = vpop.f32.mrf.mxu0
        %v824 = vadd.f32 %v782, %v823
        %825 = vmatmul.f32.gmra.mxu0 %v798
        %v826 = vpop.f32.mrf.mxu0
        %v827 = vadd.f32 %v786, %v826
        %828 = vdwg.mxu0
        %829 = vmatpush.msra.mxu0 0.0
        %830 = vmatpush.msra.mxu0 0.0
        %831 = vmatpush.msra.mxu0 0.0
        %832 = vmatpush.msra.mxu0 0.0
        %833 = vmatpush.msra.mxu0 0.0
        %834 = vmatpush.msra.mxu0 0.0
        %835 = vmatpush.msra.mxu0 0.0
        %836 = vmatpush.msra.mxu0 0.0
        %837 = vmatpush.msra.mxu0 0.0
        %838 = vmatpush.msra.mxu0 0.0
        %839 = vmatpush.msra.mxu0 0.0
        %840 = vmatpush.msra.mxu0 0.0
        %841 = vmatpush.msra.mxu0 %v764
        %842 = vmatpush.msra.mxu0 %v760
        %843 = vmatpush.msra.mxu0 %v756
        %844 = vmatpush.msra.mxu0 %v752
        %845 = vmatmul.f32.gmra.mxu0 %v789
        %v846 = vpop.f32.mrf.mxu0
        %v847 = vadd.f32 %v774, %v846
        %848 = vmatmul.f32.gmra.mxu0 %v792
        %v849 = vpop.f32.mrf.mxu0
        %v850 = vadd.f32 %v778, %v849
        %851 = vmatmul.f32.gmra.mxu0 %v795
        %v852 = vpop.f32.mrf.mxu0
        %v853 = vadd.f32 %v782, %v852
        %854 = vmatmul.f32.gmra.mxu0 %v798
        %v855 = vpop.f32.mrf.mxu0
        %v856 = vadd.f32 %v786, %v855
        %857 = vdwg.mxu0
        %858 = vmatpush.msra.mxu0 0.0
        %859 = vmatpush.msra.mxu0 0.0
        %860 = vmatpush.msra.mxu0 0.0
        %861 = vmatpush.msra.mxu0 0.0
        %862 = vmatpush.msra.mxu0 0.0
        %863 = vmatpush.msra.mxu0 0.0
        %864 = vmatpush.msra.mxu0 0.0
        %865 = vmatpush.msra.mxu0 0.0
        %866 = vmatpush.msra.mxu0 0.0
        %867 = vmatpush.msra.mxu0 0.0
        %868 = vmatpush.msra.mxu0 0.0
        %869 = vmatpush.msra.mxu0 0.0
        %870 = vmatpush.msra.mxu0 %v765
        %871 = vmatpush.msra.mxu0 %v761
        %872 = vmatpush.msra.mxu0 %v757
        %873 = vmatpush.msra.mxu0 %v753
        %874 = vmatmul.f32.gmra.mxu0 %v789
        %v875 = vpop.f32.mrf.mxu0
        %v876 = vadd.f32 %v774, %v875
        %877 = vmatmul.f32.gmra.mxu0 %v792
        %v878 = vpop.f32.mrf.mxu0
        %v879 = vadd.f32 %v778, %v878
        %880 = vmatmul.f32.gmra.mxu0 %v795
        %v881 = vpop.f32.mrf.mxu0
        %v882 = vadd.f32 %v782, %v881
        %883 = vmatmul.f32.gmra.mxu0 %v798
        %v884 = vpop.f32.mrf.mxu0
        %v885 = vadd.f32 %v786, %v884
        %886 = vdwg.mxu0
        %887 = vmatpush.msra.mxu0 0.0
        %888 = vmatpush.msra.mxu0 0.0
        %889 = vmatpush.msra.mxu0 0.0
        %890 = vmatpush.msra.mxu0 0.0
        %891 = vmatpush.msra.mxu0 0.0
        %892 = vmatpush.msra.mxu0 0.0
        %893 = vmatpush.msra.mxu0 0.0
        %894 = vmatpush.msra.mxu0 0.0
        %895 = vmatpush.msra.mxu0 0.0
        %896 = vmatpush.msra.mxu0 0.0
        %897 = vmatpush.msra.mxu0 0.0
        %898 = vmatpush.msra.mxu0 0.0
        %899 = vmatpush.msra.mxu0 %v766
        %900 = vmatpush.msra.mxu0 %v762
        %901 = vmatpush.msra.mxu0 %v758
        %902 = vmatpush.msra.mxu0 %v754
        %903 = vmatmul.f32.gmra.mxu0 %v789
        %v904 = vpop.f32.mrf.mxu0
        %v905 = vadd.f32 %v774, %v904
        %906 = vmatmul.f32.gmra.mxu0 %v792
        %v907 = vpop.f32.mrf.mxu0
        %v908 = vadd.f32 %v778, %v907
        %909 = vmatmul.f32.gmra.mxu0 %v795
        %v910 = vpop.f32.mrf.mxu0
        %v911 = vadd.f32 %v782, %v910
        %912 = vmatmul.f32.gmra.mxu0 %v798
        %v913 = vpop.f32.mrf.mxu0
        %v914 = vadd.f32 %v786, %v913
        %915 = vdwg.mxu0
        %v916 = vadd.f32 %v487, %v818
        %v917 = vadd.f32 %v516, %v847
        %v918 = vadd.f32 %v545, %v876
        %v919 = vadd.f32 %v574, %v905
        %v920 = vadd.f32 %v490, %v821
        %v921 = vadd.f32 %v519, %v850
        %v922 = vadd.f32 %v548, %v879
        %v923 = vadd.f32 %v577, %v908
        %v924 = vadd.f32 %v493, %v824
        %v925 = vadd.f32 %v522, %v853
        %v926 = vadd.f32 %v551, %v882
        %v927 = vadd.f32 %v580, %v911
        %v928 = vadd.f32 %v496, %v827
        %v929 = vadd.f32 %v525, %v856
        %v930 = vadd.f32 %v554, %v885
        %v931 = vadd.f32 %v583, %v914
        %v932 = vmax.f32 %v916, 0.0
        %v933 = vmax.f32 %v917, 0.0
        %v934 = vmax.f32 %v918, 0.0
        %v935 = vmax.f32 %v919, 0.0
        %v936 = vmax.f32 %v920, 0.0
        %v937 = vmax.f32 %v921, 0.0
        %v938 = vmax.f32 %v922, 0.0
        %v939 = vmax.f32 %v923, 0.0
        %v940 = vmax.f32 %v924, 0.0
        %v941 = vmax.f32 %v925, 0.0
        %v942 = vmax.f32 %v926, 0.0
        %v943 = vmax.f32 %v927, 0.0
        %v944 = vmax.f32 %v928, 0.0
        %v945 = vmax.f32 %v929, 0.0
        %v946 = vmax.f32 %v930, 0.0
        %v947 = vmax.f32 %v931, 0.0
        %s948 = scalar_lea.vmem %s1, 96
        %v949 = vld [vmem:[%s948] sm:$0xff]
        %v950 = vld [vmem:[%s948 + $0x8] sm:$0xff]
        %v951 = vld [vmem:[%s948 + $0x10] sm:$0xff]
        %v952 = vld [vmem:[%s948 + $0x18] sm:$0xff]
        %953 = vset.pattern.permute.xlu0 3
        %954 = vperm.xlu0 %953, %v236
        %v955 = vpop.permute.xlu0 %954
        %957 = vset.pattern.permute.xlu0 3
        %958 = vperm.xlu0 %957, %v237
        %v959 = vpop.permute.xlu0 %958
        %961 = vset.pattern.permute.xlu0 3
        %962 = vperm.xlu0 %961, %v238
        %v963 = vpop.permute.xlu0 %962
        %965 = vset.pattern.permute.xlu0 3
        %966 = vperm.xlu0 %965, %v239
        %v967 = vpop.permute.xlu0 %966
        %v970 = vsel %vm622, %v949, 0
        %v973 = vsel %vm622, %v950, 0
        %v976 = vsel %vm622, %v951, 0
        %v979 = vsel %vm622, %v952, 0
        %981 = vmatpush.msra.mxu0 0.0
        %982 = vmatpush.msra.mxu0 0.0
        %983 = vmatpush.msra.mxu0 0.0
        %984 = vmatpush.msra.mxu0 0.0
        %985 = vmatpush.msra.mxu0 0.0
        %986 = vmatpush.msra.mxu0 0.0
        %987 = vmatpush.msra.mxu0 0.0
        %988 = vmatpush.msra.mxu0 0.0
        %989 = vmatpush.msra.mxu0 0.0
        %990 = vmatpush.msra.mxu0 0.0
        %991 = vmatpush.msra.mxu0 0.0
        %992 = vmatpush.msra.mxu0 0.0
        %993 = vmatpush.msra.mxu0 %v944
        %994 = vmatpush.msra.mxu0 %v940
        %995 = vmatpush.msra.mxu0 %v936
        %996 = vmatpush.msra.mxu0 %v932
        %997 = vmatmul.f32.gmra.mxu0 %v970
        %v998 = vpop.f32.mrf.mxu0
        %v999 = vadd.f32 %v955, %v998
        %1000 = vmatmul.f32.gmra.mxu0 %v973
        %v1001 = vpop.f32.mrf.mxu0
        %v1002 = vadd.f32 %v959, %v1001
        %1003 = vmatmul.f32.gmra.mxu0 %v976
        %v1004 = vpop.f32.mrf.mxu0
        %v1005 = vadd.f32 %v963, %v1004
        %1006 = vmatmul.f32.gmra.mxu0 %v979
        %v1007 = vpop.f32.mrf.mxu0
        %v1008 = vadd.f32 %v967, %v1007
        %1009 = vdwg.mxu0
        %1010 = vmatpush.msra.mxu0 0.0
        %1011 = vmatpush.msra.mxu0 0.0
        %1012 = vmatpush.msra.mxu0 0.0
        %1013 = vmatpush.msra.mxu0 0.0
        %1014 = vmatpush.msra.mxu0 0.0
        %1015 = vmatpush.msra.mxu0 0.0
        %1016 = vmatpush.msra.mxu0 0.0
        %1017 = vmatpush.msra.mxu0 0.0
        %1018 = vmatpush.msra.mxu0 0.0
        %1019 = vmatpush.msra.mxu0 0.0
        %1020 = vmatpush.msra.mxu0 0.0
        %1021 = vmatpush.msra.mxu0 0.0
        %1022 = vmatpush.msra.mxu0 %v945
        %1023 = vmatpush.msra.mxu0 %v941
        %1024 = vmatpush.msra.mxu0 %v937
        %1025 = vmatpush.msra.mxu0 %v933
        %1026 = vmatmul.f32.gmra.mxu0 %v970
        %v1027 = vpop.f32.mrf.mxu0
        %v1028 = vadd.f32 %v955, %v1027
        %1029 = vmatmul.f32.gmra.mxu0 %v973
        %v1030 = vpop.f32.mrf.mxu0
        %v1031 = vadd.f32 %v959, %v1030
        %1032 = vmatmul.f32.gmra.mxu0 %v976
        %v1033 = vpop.f32.mrf.mxu0
        %v1034 = vadd.f32 %v963, %v1033
        %1035 = vmatmul.f32.gmra.mxu0 %v979
        %v1036 = vpop.f32.mrf.mxu0
        %v1037 = vadd.f32 %v967, %v1036
        %1038 = vdwg.mxu0
        %1039 = vmatpush.msra.mxu0 0.0
        %1040 = vmatpush.msra.mxu0 0.0
        %1041 = vmatpush.msra.mxu0 0.0
        %1042 = vmatpush.msra.mxu0 0.0
        %1043 = vmatpush.msra.mxu0 0.0
        %1044 = vmatpush.msra.mxu0 0.0
        %1045 = vmatpush.msra.mxu0 0.0
        %1046 = vmatpush.msra.mxu0 0.0
        %1047 = vmatpush.msra.mxu0 0.0
        %1048 = vmatpush.msra.mxu0 0.0
        %1049 = vmatpush.msra.mxu0 0.0
        %1050 = vmatpush.msra.mxu0 0.0
        %1051 = vmatpush.msra.mxu0 %v946
        %1052 = vmatpush.msra.mxu0 %v942
        %1053 = vmatpush.msra.mxu0 %v938
        %1054 = vmatpush.msra.mxu0 %v934
        %1055 = vmatmul.f32.gmra.mxu0 %v970
        %v1056 = vpop.f32.mrf.mxu0
        %v1057 = vadd.f32 %v955, %v1056
        %1058 = vmatmul.f32.gmra.mxu0 %v973
        %v1059 = vpop.f32.mrf.mxu0
        %v1060 = vadd.f32 %v959, %v1059
        %1061 = vmatmul.f32.gmra.mxu0 %v976
        %v1062 = vpop.f32.mrf.mxu0
        %v1063 = vadd.f32 %v963, %v1062
        %1064 = vmatmul.f32.gmra.mxu0 %v979
        %v1065 = vpop.f32.mrf.mxu0
        %v1066 = vadd.f32 %v967, %v1065
        %1067 = vdwg.mxu0
        %1068 = vmatpush.msra.mxu0 0.0
        %1069 = vmatpush.msra.mxu0 0.0
        %1070 = vmatpush.msra.mxu0 0.0
        %1071 = vmatpush.msra.mxu0 0.0
        %1072 = vmatpush.msra.mxu0 0.0
        %1073 = vmatpush.msra.mxu0 0.0
        %1074 = vmatpush.msra.mxu0 0.0
        %1075 = vmatpush.msra.mxu0 0.0
        %1076 = vmatpush.msra.mxu0 0.0
        %1077 = vmatpush.msra.mxu0 0.0
        %1078 = vmatpush.msra.mxu0 0.0
        %1079 = vmatpush.msra.mxu0 0.0
        %1080 = vmatpush.msra.mxu0 %v947
        %1081 = vmatpush.msra.mxu0 %v943
        %1082 = vmatpush.msra.mxu0 %v939
        %1083 = vmatpush.msra.mxu0 %v935
        %1084 = vmatmul.f32.gmra.mxu0 %v970
        %v1085 = vpop.f32.mrf.mxu0
        %v1086 = vadd.f32 %v955, %v1085
        %1087 = vmatmul.f32.gmra.mxu0 %v973
        %v1088 = vpop.f32.mrf.mxu0
        %v1089 = vadd.f32 %v959, %v1088
        %1090 = vmatmul.f32.gmra.mxu0 %v976
        %v1091 = vpop.f32.mrf.mxu0
        %v1092 = vadd.f32 %v963, %v1091
        %1093 = vmatmul.f32.gmra.mxu0 %v979
        %v1094 = vpop.f32.mrf.mxu0
        %v1095 = vadd.f32 %v967, %v1094
        %1096 = vdwg.mxu0
        %v1097 = vmax.f32 %v999, 0.0
        %v1098 = vmax.f32 %v1028, 0.0
        %v1099 = vmax.f32 %v1057, 0.0
        %v1100 = vmax.f32 %v1086, 0.0
        %v1101 = vmax.f32 %v1002, 0.0
        %v1102 = vmax.f32 %v1031, 0.0
        %v1103 = vmax.f32 %v1060, 0.0
        %v1104 = vmax.f32 %v1089, 0.0
        %v1105 = vmax.f32 %v1005, 0.0
        %v1106 = vmax.f32 %v1034, 0.0
        %v1107 = vmax.f32 %v1063, 0.0
        %v1108 = vmax.f32 %v1092, 0.0
        %v1109 = vmax.f32 %v1008, 0.0
        %v1110 = vmax.f32 %v1037, 0.0
        %v1111 = vmax.f32 %v1066, 0.0
        %v1112 = vmax.f32 %v1095, 0.0
        %s1113 = scalar_lea.vmem %s1, 128
        %v1114 = vld [vmem:[%s1113] sm:$0xff]
        %v1115 = vld [vmem:[%s1113 + $0x8] sm:$0xff]
        %v1116 = vld [vmem:[%s1113 + $0x10] sm:$0xff]
        %v1117 = vld [vmem:[%s1113 + $0x18] sm:$0xff]
        %1118 = vset.pattern.permute.xlu0 4
        %1119 = vperm.xlu0 %1118, %v236
        %v1120 = vpop.permute.xlu0 %1119
        %1122 = vset.pattern.permute.xlu0 4
        %1123 = vperm.xlu0 %1122, %v237
        %v1124 = vpop.permute.xlu0 %1123
        %1126 = vset.pattern.permute.xlu0 4
        %1127 = vperm.xlu0 %1126, %v238
        %v1128 = vpop.permute.xlu0 %1127
        %1130 = vset.pattern.permute.xlu0 4
        %1131 = vperm.xlu0 %1130, %v239
        %v1132 = vpop.permute.xlu0 %1131
        %v1135 = vsel %vm622, %v1114, 0
        %v1138 = vsel %vm622, %v1115, 0
        %v1141 = vsel %vm622, %v1116, 0
        %v1144 = vsel %vm622, %v1117, 0
        %1146 = vmatpush.msra.mxu0 0.0
        %1147 = vmatpush.msra.mxu0 0.0
        %1148 = vmatpush.msra.mxu0 0.0
        %1149 = vmatpush.msra.mxu0 0.0
        %1150 = vmatpush.msra.mxu0 0.0
        %1151 = vmatpush.msra.mxu0 0.0
        %1152 = vmatpush.msra.mxu0 0.0
        %1153 = vmatpush.msra.mxu0 0.0
        %1154 = vmatpush.msra.mxu0 0.0
        %1155 = vmatpush.msra.mxu0 0.0
        %1156 = vmatpush.msra.mxu0 0.0
        %1157 = vmatpush.msra.mxu0 0.0
        %1158 = vmatpush.msra.mxu0 %v1109
        %1159 = vmatpush.msra.mxu0 %v1105
        %1160 = vmatpush.msra.mxu0 %v1101
        %1161 = vmatpush.msra.mxu0 %v1097
        %1162 = vmatmul.f32.gmra.mxu0 %v1135
        %v1163 = vpop.f32.mrf.mxu0
        %v1164 = vadd.f32 %v1120, %v1163
        %1165 = vmatmul.f32.gmra.mxu0 %v1138
        %v1166 = vpop.f32.mrf.mxu0
        %v1167 = vadd.f32 %v1124, %v1166
        %1168 = vmatmul.f32.gmra.mxu0 %v1141
        %v1169 = vpop.f32.mrf.mxu0
        %v1170 = vadd.f32 %v1128, %v1169
        %1171 = vmatmul.f32.gmra.mxu0 %v1144
        %v1172 = vpop.f32.mrf.mxu0
        %v1173 = vadd.f32 %v1132, %v1172
        %1174 = vdwg.mxu0
        %1175 = vmatpush.msra.mxu0 0.0
        %1176 = vmatpush.msra.mxu0 0.0
        %1177 = vmatpush.msra.mxu0 0.0
        %1178 = vmatpush.msra.mxu0 0.0
        %1179 = vmatpush.msra.mxu0 0.0
        %1180 = vmatpush.msra.mxu0 0.0
        %1181 = vmatpush.msra.mxu0 0.0
        %1182 = vmatpush.msra.mxu0 0.0
        %1183 = vmatpush.msra.mxu0 0.0
        %1184 = vmatpush.msra.mxu0 0.0
        %1185 = vmatpush.msra.mxu0 0.0
        %1186 = vmatpush.msra.mxu0 0.0
        %1187 = vmatpush.msra.mxu0 %v1110
        %1188 = vmatpush.msra.mxu0 %v1106
        %1189 = vmatpush.msra.mxu0 %v1102
        %1190 = vmatpush.msra.mxu0 %v1098
        %1191 = vmatmul.f32.gmra.mxu0 %v1135
        %v1192 = vpop.f32.mrf.mxu0
        %v1193 = vadd.f32 %v1120, %v1192
        %1194 = vmatmul.f32.gmra.mxu0 %v1138
        %v1195 = vpop.f32.mrf.mxu0
        %v1196 = vadd.f32 %v1124, %v1195
        %1197 = vmatmul.f32.gmra.mxu0 %v1141
        %v1198 = vpop.f32.mrf.mxu0
        %v1199 = vadd.f32 %v1128, %v1198
        %1200 = vmatmul.f32.gmra.mxu0 %v1144
        %v1201 = vpop.f32.mrf.mxu0
        %v1202 = vadd.f32 %v1132, %v1201
        %1203 = vdwg.mxu0
        %1204 = vmatpush.msra.mxu0 0.0
        %1205 = vmatpush.msra.mxu0 0.0
        %1206 = vmatpush.msra.mxu0 0.0
        %1207 = vmatpush.msra.mxu0 0.0
        %1208 = vmatpush.msra.mxu0 0.0
        %1209 = vmatpush.msra.mxu0 0.0
        %1210 = vmatpush.msra.mxu0 0.0
        %1211 = vmatpush.msra.mxu0 0.0
        %1212 = vmatpush.msra.mxu0 0.0
        %1213 = vmatpush.msra.mxu0 0.0
        %1214 = vmatpush.msra.mxu0 0.0
        %1215 = vmatpush.msra.mxu0 0.0
        %1216 = vmatpush.msra.mxu0 %v1111
        %1217 = vmatpush.msra.mxu0 %v1107
        %1218 = vmatpush.msra.mxu0 %v1103
        %1219 = vmatpush.msra.mxu0 %v1099
        %1220 = vmatmul.f32.gmra.mxu0 %v1135
        %v1221 = vpop.f32.mrf.mxu0
        %v1222 = vadd.f32 %v1120, %v1221
        %1223 = vmatmul.f32.gmra.mxu0 %v1138
        %v1224 = vpop.f32.mrf.mxu0
        %v1225 = vadd.f32 %v1124, %v1224
        %1226 = vmatmul.f32.gmra.mxu0 %v1141
        %v1227 = vpop.f32.mrf.mxu0
        %v1228 = vadd.f32 %v1128, %v1227
        %1229 = vmatmul.f32.gmra.mxu0 %v1144
        %v1230 = vpop.f32.mrf.mxu0
        %v1231 = vadd.f32 %v1132, %v1230
        %1232 = vdwg.mxu0
        %1233 = vmatpush.msra.mxu0 0.0
        %1234 = vmatpush.msra.mxu0 0.0
        %1235 = vmatpush.msra.mxu0 0.0
        %1236 = vmatpush.msra.mxu0 0.0
        %1237 = vmatpush.msra.mxu0 0.0
        %1238 = vmatpush.msra.mxu0 0.0
        %1239 = vmatpush.msra.mxu0 0.0
        %1240 = vmatpush.msra.mxu0 0.0
        %1241 = vmatpush.msra.mxu0 0.0
        %1242 = vmatpush.msra.mxu0 0.0
        %1243 = vmatpush.msra.mxu0 0.0
        %1244 = vmatpush.msra.mxu0 0.0
        %1245 = vmatpush.msra.mxu0 %v1112
        %1246 = vmatpush.msra.mxu0 %v1108
        %1247 = vmatpush.msra.mxu0 %v1104
        %1248 = vmatpush.msra.mxu0 %v1100
        %1249 = vmatmul.f32.gmra.mxu0 %v1135
        %v1250 = vpop.f32.mrf.mxu0
        %v1251 = vadd.f32 %v1120, %v1250
        %1252 = vmatmul.f32.gmra.mxu0 %v1138
        %v1253 = vpop.f32.mrf.mxu0
        %v1254 = vadd.f32 %v1124, %v1253
        %1255 = vmatmul.f32.gmra.mxu0 %v1141
        %v1256 = vpop.f32.mrf.mxu0
        %v1257 = vadd.f32 %v1128, %v1256
        %1258 = vmatmul.f32.gmra.mxu0 %v1144
        %v1259 = vpop.f32.mrf.mxu0
        %v1260 = vadd.f32 %v1132, %v1259
        %1261 = vdwg.mxu0
        %v1262 = vadd.f32 %v916, %v1164
        %v1263 = vadd.f32 %v917, %v1193
        %v1264 = vadd.f32 %v918, %v1222
        %v1265 = vadd.f32 %v919, %v1251
        %v1266 = vadd.f32 %v920, %v1167
        %v1267 = vadd.f32 %v921, %v1196
        %v1268 = vadd.f32 %v922, %v1225
        %v1269 = vadd.f32 %v923, %v1254
        %v1270 = vadd.f32 %v924, %v1170
        %v1271 = vadd.f32 %v925, %v1199
        %v1272 = vadd.f32 %v926, %v1228
        %v1273 = vadd.f32 %v927, %v1257
        %v1274 = vadd.f32 %v928, %v1173
        %v1275 = vadd.f32 %v929, %v1202
        %v1276 = vadd.f32 %v930, %v1231
        %v1277 = vadd.f32 %v931, %v1260
        %s1278 = scalar_lea.vmem %s1, 160
        %v1279 = vld [vmem:[%s1278] sm:$0xff]
        %1280 = vset.pattern.permute.xlu0 5
        %1281 = vperm.xlu0 %1280, %v236
        %v1282 = vpop.permute.xlu0 %1281
        %v1285 = vsel %vm622, %v1279, 0
        %1287 = vmatpush.msra.mxu0 0.0
        %1288 = vmatpush.msra.mxu0 0.0
        %1289 = vmatpush.msra.mxu0 0.0
        %1290 = vmatpush.msra.mxu0 0.0
        %1291 = vmatpush.msra.mxu0 0.0
        %1292 = vmatpush.msra.mxu0 0.0
        %1293 = vmatpush.msra.mxu0 0.0
        %1294 = vmatpush.msra.mxu0 0.0
        %1295 = vmatpush.msra.mxu0 0.0
        %1296 = vmatpush.msra.mxu0 0.0
        %1297 = vmatpush.msra.mxu0 0.0
        %1298 = vmatpush.msra.mxu0 0.0
        %1299 = vmatpush.msra.mxu0 %v1274
        %1300 = vmatpush.msra.mxu0 %v1270
        %1301 = vmatpush.msra.mxu0 %v1266
        %1302 = vmatpush.msra.mxu0 %v1262
        %1303 = vmatmul.f32.gmra.mxu0 %v1285
        %v1304 = vpop.f32.mrf.mxu0
        %v1305 = vadd.f32 %v1282, %v1304
        %1306 = vdwg.mxu0
        %1307 = vmatpush.msra.mxu0 0.0
        %1308 = vmatpush.msra.mxu0 0.0
        %1309 = vmatpush.msra.mxu0 0.0
        %1310 = vmatpush.msra.mxu0 0.0
        %1311 = vmatpush.msra.mxu0 0.0
        %1312 = vmatpush.msra.mxu0 0.0
        %1313 = vmatpush.msra.mxu0 0.0
        %1314 = vmatpush.msra.mxu0 0.0
        %1315 = vmatpush.msra.mxu0 0.0
        %1316 = vmatpush.msra.mxu0 0.0
        %1317 = vmatpush.msra.mxu0 0.0
        %1318 = vmatpush.msra.mxu0 0.0
        %1319 = vmatpush.msra.mxu0 %v1275
        %1320 = vmatpush.msra.mxu0 %v1271
        %1321 = vmatpush.msra.mxu0 %v1267
        %1322 = vmatpush.msra.mxu0 %v1263
        %1323 = vmatmul.f32.gmra.mxu0 %v1285
        %v1324 = vpop.f32.mrf.mxu0
        %v1325 = vadd.f32 %v1282, %v1324
        %1326 = vdwg.mxu0
        %1327 = vmatpush.msra.mxu0 0.0
        %1328 = vmatpush.msra.mxu0 0.0
        %1329 = vmatpush.msra.mxu0 0.0
        %1330 = vmatpush.msra.mxu0 0.0
        %1331 = vmatpush.msra.mxu0 0.0
        %1332 = vmatpush.msra.mxu0 0.0
        %1333 = vmatpush.msra.mxu0 0.0
        %1334 = vmatpush.msra.mxu0 0.0
        %1335 = vmatpush.msra.mxu0 0.0
        %1336 = vmatpush.msra.mxu0 0.0
        %1337 = vmatpush.msra.mxu0 0.0
        %1338 = vmatpush.msra.mxu0 0.0
        %1339 = vmatpush.msra.mxu0 %v1276
        %1340 = vmatpush.msra.mxu0 %v1272
        %1341 = vmatpush.msra.mxu0 %v1268
        %1342 = vmatpush.msra.mxu0 %v1264
        %1343 = vmatmul.f32.gmra.mxu0 %v1285
        %v1344 = vpop.f32.mrf.mxu0
        %v1345 = vadd.f32 %v1282, %v1344
        %1346 = vdwg.mxu0
        %1347 = vmatpush.msra.mxu0 0.0
        %1348 = vmatpush.msra.mxu0 0.0
        %1349 = vmatpush.msra.mxu0 0.0
        %1350 = vmatpush.msra.mxu0 0.0
        %1351 = vmatpush.msra.mxu0 0.0
        %1352 = vmatpush.msra.mxu0 0.0
        %1353 = vmatpush.msra.mxu0 0.0
        %1354 = vmatpush.msra.mxu0 0.0
        %1355 = vmatpush.msra.mxu0 0.0
        %1356 = vmatpush.msra.mxu0 0.0
        %1357 = vmatpush.msra.mxu0 0.0
        %1358 = vmatpush.msra.mxu0 0.0
        %1359 = vmatpush.msra.mxu0 %v1277
        %1360 = vmatpush.msra.mxu0 %v1273
        %1361 = vmatpush.msra.mxu0 %v1269
        %1362 = vmatpush.msra.mxu0 %v1265
        %1363 = vmatmul.f32.gmra.mxu0 %v1285
        %v1364 = vpop.f32.mrf.mxu0
        %v1365 = vadd.f32 %v1282, %v1364
        %1366 = vdwg.mxu0
        %1367 = vst [vmem:[%s164] sm:$0xff] %v1305
        %1368 = vst [vmem:[%s164 + $0x8] sm:$0xff] %v1325
        %1369 = vst [vmem:[%s164 + $0x10] sm:$0xff] %v1345
        %1370 = vst [vmem:[%s164 + $0x18] sm:$0xff] %v1365
        %s1371 = sand.u32 %s93, 1
        %s1372 = scalar_lea.sflag [#allocation3], %s1371
        %s1373 = sand.u32 %s93, 1
        %s1374 = smul.addr %s1373, 32
        %s1375 = scalar_lea.vmem [#allocation2], %s1374
        // Predicated region
        $region33: #{tpu_custom_call.1} parent=31 // pred_check
          %p1376 = pneg %p103
        $region34: #{tpu_custom_call.1} parent=31 // pred_check_branch
          %1378 = sbr.rel (%p1376) target = $region36
        $region35: #{tpu_custom_call.1} parent=31 // pred_region
          %s1379 = smul.u32 4, %s17
          %1381 = vsyncadd %s1372, 0
          %s1382 = smul.addr %s1379, 8
          %s1383 = scalar_lea.hbm %s3, %s1382
          %s1385 = sshll.u32 %s1375, 4
          %s1386 = int_to_ptr.vmem [resolvable:$true] %s1385
          %s1387 = sshll.u32 %s1383, 4
          %s1388 = int_to_ptr.hbm [resolvable:$true] %s1387
          %1390 = dma.vmem_to_hbm [thread:$0]  %s1386, 512, %s1388, %s1372
        $region36: #{tpu_custom_call.1} parent=31 // pred_fallthru
          _
      $region32: #{tpu_custom_call.1} parent=5 // pred_fallthru
        _
      %p1391 = scmp.le.s32.totalorder 2, %s12
      // Predicated region
      $region37: #{tpu_custom_call.1} parent=5 // pred_check
        %p1392 = pneg %p1391
      $region38: #{tpu_custom_call.1} parent=5 // pred_check_branch
        %1394 = sbr.rel (%p1392) target = $region40
      $region39: #{tpu_custom_call.1} parent=5 // pred_region
        %s1395 = ssub.s32 %s12, 2
        // Predicated region
        $region41: #{tpu_custom_call.1} parent=39 // pred_check
          %p1396 = pneg %p109
        $region42: #{tpu_custom_call.1} parent=39 // pred_check_branch
          %1398 = sbr.rel (%p1396) target = $region44
        $region43: #{tpu_custom_call.1} parent=39 // pred_region
          %s1399 = sand.u32 %s94, 1
          %s1400 = scalar_lea.sflag [#allocation3], %s1399
          %s1401 = sand.u32 %s94, 1
          %s1402 = smul.addr %s1401, 32
          %s1403 = scalar_lea.vmem [#allocation2], %s1402
          %1405 = dma.done %s1400, 512
        $region44: #{tpu_custom_call.1} parent=39 // pred_fallthru
          _
      $region40: #{tpu_custom_call.1} parent=5 // pred_fallthru
        _
    $region6: #{tpu_custom_call.1} parent=1 // loop_footer
      %s16 = sadd.s32 1, %s12
    $region7: #{tpu_custom_call.1} parent=1 // loop_footer_branch
      %11 = sbr.rel target = $region3
    $region8: #{tpu_custom_call.1} parent=1 // loop_exit
      _
    %1406 = vsyncpa [#allocation3], 1
    %s1407 = scalar_lea.sflag [#allocation3], 1
    %1408 = vsyncpa %s1407, 1

</llo_original>
